<compile_context>
chip_gen: v7x
topology: tpu7x:2x2x1
jax: 0.10.0
libtpu: 0.0.40
codegen_flags: <defaults>
</compile_context>

<pallas_src>
import functools
import math

import jax
import jax.numpy as jnp
from jax.experimental import pallas as pl
from jax.experimental.pallas import tpu as pltpu


LAYER_NORM_EPS = 1e-12  # config.layer_norm_eps (BERT-style default)


# ----------------------------------------------------------------------------
# Fused SbertAttention kernel (one grid step == one batch element)
# ----------------------------------------------------------------------------

def _sbert_attention_kernel(hs_ref, qkv_w_ref, qkv_b_ref, o_w_ref, o_b_ref,
                            ln_g_ref, ln_b_ref, out_ref, ctx_ref, *,
                            num_heads, head_dim, eps):
    """hs:[1,S,H]f32  qkv_w:[H,3H]bf16  qkv_b:[1,3H]f32  o_w:[H,H]bf16
    o_b/ln_g/ln_b:[1,H]f32  out:[1,S,H]f32  ctx_ref: VMEM [S,H] f32 scratch."""
    H = num_heads * head_dim

    # Fused Q/K/V projection: bf16 MXU operands, f32 accumulation.
    # NOTE: 1/sqrt(dh) is already folded into the Q columns of qkv_w / qkv_b.
    x_bf16 = hs_ref[0].astype(jnp.bfloat16)                         # [S, H]
    qkv = jnp.dot(x_bf16, qkv_w_ref[...],
                  preferred_element_type=jnp.float32)               # [S, 3H] f32
    qkv = qkv + qkv_b_ref[...]                                      # f32 bias

    # Per-head attention; each head's context is stored directly into the
    # VMEM scratch slab (no live list of partials, no trailing concat).
    # For production H (multiple of 128) the Q/K/V thirds are lane-aligned;
    # the per-head dh-wide sub-slices are inherent to per-head attention.
    # TODO(synk): attention_mask / head_mask / cross-attention /
    # past_key_value / relative_key position embeddings (non-default branches)
    # are not implemented.
    for h in range(num_heads):
        lo = h * head_dim
        qh = qkv[:, lo:lo + head_dim].astype(jnp.bfloat16)          # [S, dh]
        kh = qkv[:, H + lo:H + lo + head_dim].astype(jnp.bfloat16)  # [S, dh]
        vh = qkv[:, 2 * H + lo:2 * H + lo + head_dim].astype(jnp.bfloat16)
        # scores = (q/sqrt(dh)) @ k^T   (additive mask is exactly None here)
        s = jax.lax.dot_general(qh, kh, (((1,), (1,)), ((), ())),
                                preferred_element_type=jnp.float32)  # [S, S]
        s = s - jnp.max(s, axis=-1, keepdims=True)
        e = jnp.exp(s)
        p = e / jnp.sum(e, axis=-1, keepdims=True)                  # exact recip
        ctx_ref[:, lo:lo + head_dim] = jnp.dot(
            p.astype(jnp.bfloat16), vh, preferred_element_type=jnp.float32)

    # SbertSelfOutput: dense -> (dropout = identity) -> residual -> LayerNorm.
    y = jnp.dot(ctx_ref[...].astype(jnp.bfloat16), o_w_ref[...],
                preferred_element_type=jnp.float32)                 # [S, H]
    y = y + o_b_ref[...] + hs_ref[0]          # residual re-read from VMEM (f32)

    # One-pass LayerNorm statistics: var = E[y^2] - mean^2 (independent reduces).
    mean = jnp.mean(y, axis=-1, keepdims=True)
    mean_sq = jnp.mean(y * y, axis=-1, keepdims=True)
    var = mean_sq - mean * mean
    normed = (y - mean) * jax.lax.rsqrt(var + eps)
    out_ref[0] = (normed * ln_g_ref[...] + ln_b_ref[...]).astype(out_ref.dtype)


def sbert_attention_forward(params, hidden_states):
    """hidden_states: [B, S, H] f32 -> attention_output: [B, S, H] f32."""
    B, S, H = hidden_states.shape
    nh = params["num_heads"]
    dh = H // nh

    kernel = functools.partial(
        _sbert_attention_kernel, num_heads=nh, head_dim=dh, eps=LAYER_NORM_EPS)

    # Grid-invariant parameters: whole-array, single-buffered VMEM residency.
    w_spec = pl.BlockSpec(memory_space=pltpu.MemorySpace.VMEM)

    # TODO(synk): for v7x with small B, a second (query-row-tile) grid axis and
    # CORE_PARALLEL semantics would improve 2-TC load balance; kept portable here.
    return pl.pallas_call(
        kernel,
        out_shape=jax.ShapeDtypeStruct((B, S, H), hidden_states.dtype),
        grid=(B,),
        in_specs=[
            pl.BlockSpec((1, S, H), lambda b: (b, 0, 0)),   # hidden states tile
            w_spec,                                         # fused QKV weight (bf16)
            w_spec,                                         # fused QKV bias (f32)
            w_spec,                                         # output dense weight (bf16)
            w_spec,                                         # output dense bias (f32)
            w_spec,                                         # LayerNorm gamma (f32)
            w_spec,                                         # LayerNorm beta (f32)
        ],
        out_specs=pl.BlockSpec((1, S, H), lambda b: (b, 0, 0)),
        scratch_shapes=[pltpu.VMEM((S, H), jnp.float32)],   # per-batch context slab
        compiler_params=pltpu.CompilerParams(
            dimension_semantics=("parallel",),              # batch axis independent
            vmem_limit_bytes=48 * 1024 * 1024),             # explicit; fits v7x 64 MiB
    )(hidden_states, params["qkv_w"], params["qkv_b"], params["o_w"],
      params["o_b"], params["ln_g"], params["ln_b"])


# ----------------------------------------------------------------------------
# Pure-JAX reference (mirrors the PyTorch module, f32, unfused weights)
# ----------------------------------------------------------------------------

def sbert_attention_reference(params, hidden_states):
    raw = params["_raw"]
    B, S, H = hidden_states.shape
    nh = params["num_heads"]
    dh = H // nh
    q = hidden_states @ raw["qw"] + raw["qb"]
    k = hidden_states @ raw["kw"] + raw["kb"]
    v = hidden_states @ raw["vw"] + raw["vb"]

    def split(t):
        return t.reshape(B, S, nh, dh).transpose(0, 2, 1, 3)      # [B, nh, S, dh]

    q, k, v = split(q), split(k), split(v)
    s = jnp.einsum("bhqd,bhkd->bhqk", q, k) / math.sqrt(dh)
    p = jax.nn.softmax(s, axis=-1)
    ctx = jnp.einsum("bhqk,bhkd->bhqd", p, v).transpose(0, 2, 1, 3).reshape(B, S, H)
    y = ctx @ raw["ow"] + raw["ob"] + hidden_states
    mean = y.mean(-1, keepdims=True)
    var = ((y - mean) ** 2).mean(-1, keepdims=True)
    return ((y - mean) / jnp.sqrt(var + LAYER_NORM_EPS)
            * params["ln_g"][0] + params["ln_b"][0])


# ----------------------------------------------------------------------------
# Deterministic parameter construction (weights stored as [in, out])
# ----------------------------------------------------------------------------

def make_params(key, H, nh, std=0.02):
    dh = H // nh
    scale = 1.0 / math.sqrt(dh)
    ks = jax.random.split(key, 8)
    qw = jax.random.normal(ks[0], (H, H), jnp.float32) * std
    kw = jax.random.normal(ks[1], (H, H), jnp.float32) * std
    vw = jax.random.normal(ks[2], (H, H), jnp.float32) * std
    ow = jax.random.normal(ks[3], (H, H), jnp.float32) * std
    qb = jax.random.normal(ks[4], (H,), jnp.float32) * std
    kb = jax.random.normal(ks[5], (H,), jnp.float32) * std
    vb = jax.random.normal(ks[6], (H,), jnp.float32) * std
    ob = jax.random.normal(ks[7], (H,), jnp.float32) * std
    return dict(
        num_heads=nh,
        # QKV fused once; 1/sqrt(dh) folded into the Q weight AND Q bias;
        # matmul operands stored in bf16 (accumulation stays f32 in-kernel).
        qkv_w=jnp.concatenate([qw * scale, kw, vw], axis=1).astype(jnp.bfloat16),
        qkv_b=jnp.concatenate([qb * scale, kb, vb]).reshape(1, 3 * H),   # f32
        o_w=ow.astype(jnp.bfloat16),
        o_b=ob.reshape(1, H),
        ln_g=jnp.ones((1, H), jnp.float32),
        ln_b=jnp.zeros((1, H), jnp.float32),
        # raw f32 copies, only used by the pure-JAX reference.
        _raw=dict(qw=qw, kw=kw, vw=vw, ow=ow, qb=qb, kb=kb, vb=vb, ob=ob),
    )


# ----------------------------------------------------------------------------
# Main
# ----------------------------------------------------------------------------

if __name__ == "__main__":
    B, S, H, NH = 2, 8, 32, 4      # batch, seq, hidden, attention heads (dh=8)

    key = jax.random.PRNGKey(0)
    k_x, k_p = jax.random.split(key)
    hidden = jax.random.normal(k_x, (B, S, H), jnp.float32)
    params = make_params(k_p, H, NH)

    out = sbert_attention_forward(params, hidden)
    out = jax.block_until_ready(out)

    assert out.shape == (B, S, H) and out.dtype == jnp.float32
    assert bool(jnp.all(jnp.isfinite(out)))

    ref = sbert_attention_reference(params, hidden)
    max_err = float(jnp.max(jnp.abs(out - ref)))
    # tolerance covers bf16 rounding of the MXU operands (softmax recip is exact)
    assert max_err < 2e-2, f"max abs err {max_err}"

    print("KERNEL_OK")
</pallas_src>

<mosaic_0001>
module attributes {stable_mosaic.version = 11 : i64} {
  func.func @_sbert_attention_kernel(%arg0: i32, %arg1: memref<1x8x32xf32, #tpu.memory_space<vmem>>, %arg2: memref<32x96xbf16, #tpu.memory_space<vmem>>, %arg3: memref<1x96xf32, #tpu.memory_space<vmem>>, %arg4: memref<32x32xbf16, #tpu.memory_space<vmem>>, %arg5: memref<1x32xf32, #tpu.memory_space<vmem>>, %arg6: memref<1x32xf32, #tpu.memory_space<vmem>>, %arg7: memref<1x32xf32, #tpu.memory_space<vmem>>, %arg8: memref<1x8x32xf32, #tpu.memory_space<vmem>>, %arg9: memref<8x32xf32, #tpu.memory_space<vmem>>) attributes {dimension_semantics = [#tpu.dimension_semantics<parallel>], iteration_bounds = array<i64: 2>, scalar_prefetch = 0 : i64, scratch_operands = 1 : i64, tpu.core_type = #tpu.core_type<tc>, window_params = [{transform_indices = @transform_0, window_bounds = array<i64: 1, 8, 32>}, {pipeline_mode = #tpu.pipeline_mode<synchronous>, transform_indices = @transform_1, window_bounds = array<i64: 32, 96>}, {pipeline_mode = #tpu.pipeline_mode<synchronous>, transform_indices = @transform_2, window_bounds = array<i64: 1, 96>}, {pipeline_mode = #tpu.pipeline_mode<synchronous>, transform_indices = @transform_3, window_bounds = array<i64: 32, 32>}, {pipeline_mode = #tpu.pipeline_mode<synchronous>, transform_indices = @transform_4, window_bounds = array<i64: 1, 32>}, {pipeline_mode = #tpu.pipeline_mode<synchronous>, transform_indices = @transform_5, window_bounds = array<i64: 1, 32>}, {pipeline_mode = #tpu.pipeline_mode<synchronous>, transform_indices = @transform_6, window_bounds = array<i64: 1, 32>}, {transform_indices = @transform_7, window_bounds = array<i64: 1, 8, 32>}]} {
    %c0 = arith.constant 0 : index
    %c0_0 = arith.constant 0 : index
    %c0_1 = arith.constant 0 : index
    %0 = vector.load %arg1[%c0, %c0_0, %c0_1] : memref<1x8x32xf32, #tpu.memory_space<vmem>>, vector<1x8x32xf32>
    %1 = vector.shape_cast %0 : vector<1x8x32xf32> to vector<8x32xf32>
    %2 = arith.truncf %1 : vector<8x32xf32> to vector<8x32xbf16>
    %c0_2 = arith.constant 0 : index
    %c0_3 = arith.constant 0 : index
    %3 = vector.load %arg2[%c0_2, %c0_3] : memref<32x96xbf16, #tpu.memory_space<vmem>>, vector<32x96xbf16>
    %cst = arith.constant dense<0.000000e+00> : vector<8x96xf32>
    %4 = tpu.matmul %2, %3, %cst {dimension_numbers = #tpu.dot_dimension_numbers<[1], [0], [0], [1], [0, 0, 1, 1], [], []>} : vector<8x32xbf16>, vector<32x96xbf16>, vector<8x96xf32> -> vector<8x96xf32>
    %c0_4 = arith.constant 0 : index
    %c0_5 = arith.constant 0 : index
    %5 = vector.load %arg3[%c0_4, %c0_5] : memref<1x96xf32, #tpu.memory_space<vmem>>, vector<1x96xf32>
    %6 = vector.broadcast %5 : vector<1x96xf32> to vector<8x96xf32>
    %7 = arith.addf %4, %6 : vector<8x96xf32>
    %8 = vector.extract_strided_slice %7 {offsets = [0, 0], sizes = [8, 8], strides = [1, 1]} : vector<8x96xf32> to vector<8x8xf32>
    %9 = arith.truncf %8 : vector<8x8xf32> to vector<8x8xbf16>
    %10 = vector.extract_strided_slice %7 {offsets = [0, 32], sizes = [8, 8], strides = [1, 1]} : vector<8x96xf32> to vector<8x8xf32>
    %11 = arith.truncf %10 : vector<8x8xf32> to vector<8x8xbf16>
    %12 = vector.extract_strided_slice %7 {offsets = [0, 64], sizes = [8, 8], strides = [1, 1]} : vector<8x96xf32> to vector<8x8xf32>
    %13 = arith.truncf %12 : vector<8x8xf32> to vector<8x8xbf16>
    %cst_6 = arith.constant dense<0.000000e+00> : vector<8x8xf32>
    %14 = tpu.matmul %9, %11, %cst_6 {dimension_numbers = #tpu.dot_dimension_numbers<[1], [1], [0], [0], [0, 0, 1, 0], [], []>} : vector<8x8xbf16>, vector<8x8xbf16>, vector<8x8xf32> -> vector<8x8xf32>
    %cst_7 = arith.constant dense<0xFF800000> : vector<8xf32>
    %15 = vector.multi_reduction <maximumf>, %14, %cst_7 [1] : vector<8x8xf32> to vector<8xf32>
    %16 = vector.shape_cast %15 : vector<8xf32> to vector<8x1xf32>
    %17 = vector.broadcast %16 : vector<8x1xf32> to vector<8x8xf32>
    %18 = arith.subf %14, %17 : vector<8x8xf32>
    %19 = math.exp %18 : vector<8x8xf32>
    %cst_8 = arith.constant dense<0.000000e+00> : vector<8xf32>
    %20 = vector.multi_reduction <add>, %19, %cst_8 [1] : vector<8x8xf32> to vector<8xf32>
    %21 = vector.shape_cast %20 : vector<8xf32> to vector<8x1xf32>
    %22 = vector.broadcast %21 : vector<8x1xf32> to vector<8x8xf32>
    %23 = arith.divf %19, %22 : vector<8x8xf32>
    %24 = arith.truncf %23 : vector<8x8xf32> to vector<8x8xbf16>
    %cst_9 = arith.constant dense<0.000000e+00> : vector<8x8xf32>
    %25 = tpu.matmul %24, %13, %cst_9 {dimension_numbers = #tpu.dot_dimension_numbers<[1], [0], [0], [1], [0, 0, 1, 1], [], []>} : vector<8x8xbf16>, vector<8x8xbf16>, vector<8x8xf32> -> vector<8x8xf32>
    %c0_10 = arith.constant 0 : index
    %c0_11 = arith.constant 0 : index
    %26 = vector.load %arg9[%c0_10, %c0_11] : memref<8x32xf32, #tpu.memory_space<vmem>>, vector<8x8xf32>
    tpu.vector_store %arg9[%c0_10, %c0_11], %25 {strides = array<i32>} : memref<8x32xf32, #tpu.memory_space<vmem>>, vector<8x8xf32>,
    %27 = vector.extract_strided_slice %7 {offsets = [0, 8], sizes = [8, 8], strides = [1, 1]} : vector<8x96xf32> to vector<8x8xf32>
    %28 = arith.truncf %27 : vector<8x8xf32> to vector<8x8xbf16>
    %29 = vector.extract_strided_slice %7 {offsets = [0, 40], sizes = [8, 8], strides = [1, 1]} : vector<8x96xf32> to vector<8x8xf32>
    %30 = arith.truncf %29 : vector<8x8xf32> to vector<8x8xbf16>
    %31 = vector.extract_strided_slice %7 {offsets = [0, 72], sizes = [8, 8], strides = [1, 1]} : vector<8x96xf32> to vector<8x8xf32>
    %32 = arith.truncf %31 : vector<8x8xf32> to vector<8x8xbf16>
    %cst_12 = arith.constant dense<0.000000e+00> : vector<8x8xf32>
    %33 = tpu.matmul %28, %30, %cst_12 {dimension_numbers = #tpu.dot_dimension_numbers<[1], [1], [0], [0], [0, 0, 1, 0], [], []>} : vector<8x8xbf16>, vector<8x8xbf16>, vector<8x8xf32> -> vector<8x8xf32>
    %cst_13 = arith.constant dense<0xFF800000> : vector<8xf32>
    %34 = vector.multi_reduction <maximumf>, %33, %cst_13 [1] : vector<8x8xf32> to vector<8xf32>
    %35 = vector.shape_cast %34 : vector<8xf32> to vector<8x1xf32>
    %36 = vector.broadcast %35 : vector<8x1xf32> to vector<8x8xf32>
    %37 = arith.subf %33, %36 : vector<8x8xf32>
    %38 = math.exp %37 : vector<8x8xf32>
    %cst_14 = arith.constant dense<0.000000e+00> : vector<8xf32>
    %39 = vector.multi_reduction <add>, %38, %cst_14 [1] : vector<8x8xf32> to vector<8xf32>
    %40 = vector.shape_cast %39 : vector<8xf32> to vector<8x1xf32>
    %41 = vector.broadcast %40 : vector<8x1xf32> to vector<8x8xf32>
    %42 = arith.divf %38, %41 : vector<8x8xf32>
    %43 = arith.truncf %42 : vector<8x8xf32> to vector<8x8xbf16>
    %cst_15 = arith.constant dense<0.000000e+00> : vector<8x8xf32>
    %44 = tpu.matmul %43, %32, %cst_15 {dimension_numbers = #tpu.dot_dimension_numbers<[1], [0], [0], [1], [0, 0, 1, 1], [], []>} : vector<8x8xbf16>, vector<8x8xbf16>, vector<8x8xf32> -> vector<8x8xf32>
    %c0_16 = arith.constant 0 : index
    %c8 = arith.constant 8 : index
    %45 = vector.load %arg9[%c0_16, %c8] : memref<8x32xf32, #tpu.memory_space<vmem>>, vector<8x8xf32>
    tpu.vector_store %arg9[%c0_16, %c8], %44 {strides = array<i32>} : memref<8x32xf32, #tpu.memory_space<vmem>>, vector<8x8xf32>,
    %46 = vector.extract_strided_slice %7 {offsets = [0, 16], sizes = [8, 8], strides = [1, 1]} : vector<8x96xf32> to vector<8x8xf32>
    %47 = arith.truncf %46 : vector<8x8xf32> to vector<8x8xbf16>
    %48 = vector.extract_strided_slice %7 {offsets = [0, 48], sizes = [8, 8], strides = [1, 1]} : vector<8x96xf32> to vector<8x8xf32>
    %49 = arith.truncf %48 : vector<8x8xf32> to vector<8x8xbf16>
    %50 = vector.extract_strided_slice %7 {offsets = [0, 80], sizes = [8, 8], strides = [1, 1]} : vector<8x96xf32> to vector<8x8xf32>
    %51 = arith.truncf %50 : vector<8x8xf32> to vector<8x8xbf16>
    %cst_17 = arith.constant dense<0.000000e+00> : vector<8x8xf32>
    %52 = tpu.matmul %47, %49, %cst_17 {dimension_numbers = #tpu.dot_dimension_numbers<[1], [1], [0], [0], [0, 0, 1, 0], [], []>} : vector<8x8xbf16>, vector<8x8xbf16>, vector<8x8xf32> -> vector<8x8xf32>
    %cst_18 = arith.constant dense<0xFF800000> : vector<8xf32>
    %53 = vector.multi_reduction <maximumf>, %52, %cst_18 [1] : vector<8x8xf32> to vector<8xf32>
    %54 = vector.shape_cast %53 : vector<8xf32> to vector<8x1xf32>
    %55 = vector.broadcast %54 : vector<8x1xf32> to vector<8x8xf32>
    %56 = arith.subf %52, %55 : vector<8x8xf32>
    %57 = math.exp %56 : vector<8x8xf32>
    %cst_19 = arith.constant dense<0.000000e+00> : vector<8xf32>
    %58 = vector.multi_reduction <add>, %57, %cst_19 [1] : vector<8x8xf32> to vector<8xf32>
    %59 = vector.shape_cast %58 : vector<8xf32> to vector<8x1xf32>
    %60 = vector.broadcast %59 : vector<8x1xf32> to vector<8x8xf32>
    %61 = arith.divf %57, %60 : vector<8x8xf32>
    %62 = arith.truncf %61 : vector<8x8xf32> to vector<8x8xbf16>
    %cst_20 = arith.constant dense<0.000000e+00> : vector<8x8xf32>
    %63 = tpu.matmul %62, %51, %cst_20 {dimension_numbers = #tpu.dot_dimension_numbers<[1], [0], [0], [1], [0, 0, 1, 1], [], []>} : vector<8x8xbf16>, vector<8x8xbf16>, vector<8x8xf32> -> vector<8x8xf32>
    %c0_21 = arith.constant 0 : index
    %c16 = arith.constant 16 : index
    %64 = vector.load %arg9[%c0_21, %c16] : memref<8x32xf32, #tpu.memory_space<vmem>>, vector<8x8xf32>
    tpu.vector_store %arg9[%c0_21, %c16], %63 {strides = array<i32>} : memref<8x32xf32, #tpu.memory_space<vmem>>, vector<8x8xf32>,
    %65 = vector.extract_strided_slice %7 {offsets = [0, 24], sizes = [8, 8], strides = [1, 1]} : vector<8x96xf32> to vector<8x8xf32>
    %66 = arith.truncf %65 : vector<8x8xf32> to vector<8x8xbf16>
    %67 = vector.extract_strided_slice %7 {offsets = [0, 56], sizes = [8, 8], strides = [1, 1]} : vector<8x96xf32> to vector<8x8xf32>
    %68 = arith.truncf %67 : vector<8x8xf32> to vector<8x8xbf16>
    %69 = vector.extract_strided_slice %7 {offsets = [0, 88], sizes = [8, 8], strides = [1, 1]} : vector<8x96xf32> to vector<8x8xf32>
    %70 = arith.truncf %69 : vector<8x8xf32> to vector<8x8xbf16>
    %cst_22 = arith.constant dense<0.000000e+00> : vector<8x8xf32>
    %71 = tpu.matmul %66, %68, %cst_22 {dimension_numbers = #tpu.dot_dimension_numbers<[1], [1], [0], [0], [0, 0, 1, 0], [], []>} : vector<8x8xbf16>, vector<8x8xbf16>, vector<8x8xf32> -> vector<8x8xf32>
    %cst_23 = arith.constant dense<0xFF800000> : vector<8xf32>
    %72 = vector.multi_reduction <maximumf>, %71, %cst_23 [1] : vector<8x8xf32> to vector<8xf32>
    %73 = vector.shape_cast %72 : vector<8xf32> to vector<8x1xf32>
    %74 = vector.broadcast %73 : vector<8x1xf32> to vector<8x8xf32>
    %75 = arith.subf %71, %74 : vector<8x8xf32>
    %76 = math.exp %75 : vector<8x8xf32>
    %cst_24 = arith.constant dense<0.000000e+00> : vector<8xf32>
    %77 = vector.multi_reduction <add>, %76, %cst_24 [1] : vector<8x8xf32> to vector<8xf32>
    %78 = vector.shape_cast %77 : vector<8xf32> to vector<8x1xf32>
    %79 = vector.broadcast %78 : vector<8x1xf32> to vector<8x8xf32>
    %80 = arith.divf %76, %79 : vector<8x8xf32>
    %81 = arith.truncf %80 : vector<8x8xf32> to vector<8x8xbf16>
    %cst_25 = arith.constant dense<0.000000e+00> : vector<8x8xf32>
    %82 = tpu.matmul %81, %70, %cst_25 {dimension_numbers = #tpu.dot_dimension_numbers<[1], [0], [0], [1], [0, 0, 1, 1], [], []>} : vector<8x8xbf16>, vector<8x8xbf16>, vector<8x8xf32> -> vector<8x8xf32>
    %c0_26 = arith.constant 0 : index
    %c24 = arith.constant 24 : index
    %83 = vector.load %arg9[%c0_26, %c24] : memref<8x32xf32, #tpu.memory_space<vmem>>, vector<8x8xf32>
    tpu.vector_store %arg9[%c0_26, %c24], %82 {strides = array<i32>} : memref<8x32xf32, #tpu.memory_space<vmem>>, vector<8x8xf32>,
    %c0_27 = arith.constant 0 : index
    %c0_28 = arith.constant 0 : index
    %84 = vector.load %arg9[%c0_27, %c0_28] : memref<8x32xf32, #tpu.memory_space<vmem>>, vector<8x32xf32>
    %85 = arith.truncf %84 : vector<8x32xf32> to vector<8x32xbf16>
    %c0_29 = arith.constant 0 : index
    %c0_30 = arith.constant 0 : index
    %86 = vector.load %arg4[%c0_29, %c0_30] : memref<32x32xbf16, #tpu.memory_space<vmem>>, vector<32x32xbf16>
    %cst_31 = arith.constant dense<0.000000e+00> : vector<8x32xf32>
    %87 = tpu.matmul %85, %86, %cst_31 {dimension_numbers = #tpu.dot_dimension_numbers<[1], [0], [0], [1], [0, 0, 1, 1], [], []>} : vector<8x32xbf16>, vector<32x32xbf16>, vector<8x32xf32> -> vector<8x32xf32>
    %c0_32 = arith.constant 0 : index
    %c0_33 = arith.constant 0 : index
    %88 = vector.load %arg5[%c0_32, %c0_33] : memref<1x32xf32, #tpu.memory_space<vmem>>, vector<1x32xf32>
    %89 = vector.broadcast %88 : vector<1x32xf32> to vector<8x32xf32>
    %90 = arith.addf %87, %89 : vector<8x32xf32>
    %c0_34 = arith.constant 0 : index
    %c0_35 = arith.constant 0 : index
    %c0_36 = arith.constant 0 : index
    %91 = vector.load %arg1[%c0_34, %c0_35, %c0_36] : memref<1x8x32xf32, #tpu.memory_space<vmem>>, vector<1x8x32xf32>
    %92 = vector.shape_cast %91 : vector<1x8x32xf32> to vector<8x32xf32>
    %93 = arith.addf %90, %92 : vector<8x32xf32>
    %cst_37 = arith.constant dense<0.000000e+00> : vector<8xf32>
    %94 = vector.multi_reduction <add>, %93, %cst_37 [1] : vector<8x32xf32> to vector<8xf32>
    %95 = vector.shape_cast %94 : vector<8xf32> to vector<8x1xf32>
    %cst_38 = arith.constant 3.200000e+01 : f32
    %96 = vector.broadcast %cst_38 : f32 to vector<8x1xf32>
    %97 = arith.divf %95, %96 : vector<8x1xf32>
    %98 = arith.mulf %93, %93 : vector<8x32xf32>
    %cst_39 = arith.constant dense<0.000000e+00> : vector<8xf32>
    %99 = vector.multi_reduction <add>, %98, %cst_39 [1] : vector<8x32xf32> to vector<8xf32>
    %100 = vector.shape_cast %99 : vector<8xf32> to vector<8x1xf32>
    %cst_40 = arith.constant 3.200000e+01 : f32
    %101 = vector.broadcast %cst_40 : f32 to vector<8x1xf32>
    %102 = arith.divf %100, %101 : vector<8x1xf32>
    %103 = arith.mulf %97, %97 : vector<8x1xf32>
    %104 = arith.subf %102, %103 : vector<8x1xf32>
    %105 = vector.broadcast %97 : vector<8x1xf32> to vector<8x32xf32>
    %106 = arith.subf %93, %105 : vector<8x32xf32>
    %cst_41 = arith.constant 9.99999996E-13 : f32
    %107 = vector.broadcast %cst_41 : f32 to vector<8x1xf32>
    %108 = arith.addf %104, %107 : vector<8x1xf32>
    %109 = math.rsqrt %108 : vector<8x1xf32>
    %110 = vector.broadcast %109 : vector<8x1xf32> to vector<8x32xf32>
    %111 = arith.mulf %106, %110 : vector<8x32xf32>
    %c0_42 = arith.constant 0 : index
    %c0_43 = arith.constant 0 : index
    %112 = vector.load %arg6[%c0_42, %c0_43] : memref<1x32xf32, #tpu.memory_space<vmem>>, vector<1x32xf32>
    %113 = vector.broadcast %112 : vector<1x32xf32> to vector<8x32xf32>
    %114 = arith.mulf %111, %113 : vector<8x32xf32>
    %c0_44 = arith.constant 0 : index
    %c0_45 = arith.constant 0 : index
    %115 = vector.load %arg7[%c0_44, %c0_45] : memref<1x32xf32, #tpu.memory_space<vmem>>, vector<1x32xf32>
    %116 = vector.broadcast %115 : vector<1x32xf32> to vector<8x32xf32>
    %117 = arith.addf %114, %116 : vector<8x32xf32>
    %c0_46 = arith.constant 0 : index
    %c0_47 = arith.constant 0 : index
    %c0_48 = arith.constant 0 : index
    %118 = vector.load %arg8[%c0_46, %c0_47, %c0_48] : memref<1x8x32xf32, #tpu.memory_space<vmem>>, vector<1x8x32xf32>
    %119 = vector.shape_cast %118 : vector<1x8x32xf32> to vector<8x32xf32>
    %120 = vector.shape_cast %117 : vector<8x32xf32> to vector<1x8x32xf32>
    tpu.vector_store %arg8[%c0_46, %c0_47, %c0_48], %120 {strides = array<i32>} : memref<1x8x32xf32, #tpu.memory_space<vmem>>, vector<1x8x32xf32>,
    return
  }
  func.func @transform_0(%arg0: i32) -> (i32, i32, i32) {
    %c0_i32 = arith.constant 0 : i32
    %c0_i32_0 = arith.constant 0 : i32
    %c0_i32_1 = arith.constant 0 : i32
    return %arg0, %c0_i32, %c0_i32_0 : i32, i32, i32
  }
  func.func @transform_1(%arg0: i32) -> (i32, i32) {
    %c0_i32 = arith.constant 0 : i32
    %c0_i32_0 = arith.constant 0 : i32
    %c0_i32_1 = arith.constant 0 : i32
    return %c0_i32, %c0_i32_0 : i32, i32
  }
  func.func @transform_2(%arg0: i32) -> (i32, i32) {
    %c0_i32 = arith.constant 0 : i32
    %c0_i32_0 = arith.constant 0 : i32
    %c0_i32_1 = arith.constant 0 : i32
    return %c0_i32, %c0_i32_0 : i32, i32
  }
  func.func @transform_3(%arg0: i32) -> (i32, i32) {
    %c0_i32 = arith.constant 0 : i32
    %c0_i32_0 = arith.constant 0 : i32
    %c0_i32_1 = arith.constant 0 : i32
    return %c0_i32, %c0_i32_0 : i32, i32
  }
  func.func @transform_4(%arg0: i32) -> (i32, i32) {
    %c0_i32 = arith.constant 0 : i32
    %c0_i32_0 = arith.constant 0 : i32
    %c0_i32_1 = arith.constant 0 : i32
    return %c0_i32, %c0_i32_0 : i32, i32
  }
  func.func @transform_5(%arg0: i32) -> (i32, i32) {
    %c0_i32 = arith.constant 0 : i32
    %c0_i32_0 = arith.constant 0 : i32
    %c0_i32_1 = arith.constant 0 : i32
    return %c0_i32, %c0_i32_0 : i32, i32
  }
  func.func @transform_6(%arg0: i32) -> (i32, i32) {
    %c0_i32 = arith.constant 0 : i32
    %c0_i32_0 = arith.constant 0 : i32
    %c0_i32_1 = arith.constant 0 : i32
    return %c0_i32, %c0_i32_0 : i32, i32
  }
  func.func @transform_7(%arg0: i32) -> (i32, i32, i32) {
    %c0_i32 = arith.constant 0 : i32
    %c0_i32_0 = arith.constant 0 : i32
    %c0_i32_1 = arith.constant 0 : i32
    return %arg0, %c0_i32, %c0_i32_0 : i32, i32, i32
  }
}

</mosaic_0001>

<llo_original>
// kernel: tpu_custom_call.1
$region0: #{tpu_custom_call.1}
  #allocation0 [shape = 'u32[]', space=smem, size = 0x4, offset = 0x4, fixed_abs, tag = 'smem constant byte address 0x4 - core index']
  #allocation1 [shape = 'u32[144,128]{1,0:T(1,128)}', space=vmem, size = 0x12000, scoped, tag = 'internal scratch']
  #allocation2 [shape = 'f32[8,32]{1,0:T(8,128)}', space=vmem, size = 0x1000, scoped, tag = 'scratch operand']
  %s0 = inlined_call_operand.hbm [shape: f32[2,8,32], index: 0, kind: input, shape index: {}]
  %s1 = inlined_call_operand.hbm [shape: bf16[32,96], index: 1, kind: input, shape index: {}]
  %s2 = inlined_call_operand.vmem [shape: f32[1,96], index: 2, kind: input, shape index: {}]
  %s3 = inlined_call_operand.hbm [shape: bf16[32,32], index: 3, kind: input, shape index: {}]
  %s4 = inlined_call_operand.vmem [shape: f32[1,32], index: 4, kind: input, shape index: {}]
  %s5 = inlined_call_operand.vmem [shape: f32[1,32], index: 5, kind: input, shape index: {}]
  %s6 = inlined_call_operand.vmem [shape: f32[1,32], index: 6, kind: input, shape index: {}]
  %s7 = inlined_call_operand.hbm [shape: f32[2,8,32], index: 7, kind: output, shape index: {}]
  %s8 = sld [smem:[#allocation0]]
  $region73: #{tpu_custom_call.1} parent=0
    _
  %s10 = ssub.s32 1, %s8
  %s11 = scalar_select 0, %s10, %s8
  $region1: #{tpu_custom_call.1} parent=0
    #allocation3 [shape = 'u8[8192]{0}', space=vmem, size = 0x2000, scoped, tag = 'input window, operand 0']
    #allocation4 [shape = 's32[2]{0}', space=sflag, size = 0x8, scoped, tag = 'scoped memory for tpu_custom_call.1']
    #allocation5 [shape = 's32[2]{0}', space=sflag, size = 0x8, scoped, tag = 'scoped memory for tpu_custom_call.1']
    #allocation6 [shape = 'u8[8192]{0}', space=vmem, size = 0x2000, scoped, tag = 'input window, operand 1, single buffered']
    #allocation7 [shape = 's32[1]{0}', space=sflag, size = 0x4, scoped, tag = 'scoped memory for tpu_custom_call.1']
    #allocation8 [shape = 'u8[8192]{0}', space=vmem, size = 0x2000, scoped, tag = 'input window, operand 3, single buffered']
    #allocation9 [shape = 'u8[8192]{0}', space=vmem, size = 0x2000, scoped, tag = 'output window, operand 0']
    %12 = vsyncpa [#allocation4], 0
    %s13 = scalar_lea.sflag [#allocation4], 1
    %14 = vsyncpa %s13, 0
    %15 = vsyncpa [#allocation7], 0
    %16 = vsyncpa [#allocation5], 0
    %s17 = scalar_lea.sflag [#allocation5], 1
    %18 = vsyncpa %s17, 0
    loop: start=0, step=1, limit=4
    $region2: #{tpu_custom_call.1} parent=1 // loop_pre_header
      _
    $region3: #{tpu_custom_call.1} parent=1 // loop_header
      %s20 = sphi 0, %s24
      %p21 = scmp.ge.s32.totalorder %s20, 4
      %s30 = sphi 0, %s32
      %s33 = sphi 0, %s30
      %s34 = sphi 0, %s33
      %s50 = sphi 0, %s34
      %s54 = sphi 0, %s54
      %s56 = sphi 0, %s54
      %s57 = sphi 0, %s56
      %s71 = sphi 0, %s57
      %s75 = sphi 0, %s75
      %s77 = sphi 0, %s75
      %s78 = sphi 0, %s77
      %s92 = sphi 0, %s78
      %s96 = sphi 0, %s96
      %s98 = sphi 0, %s96
      %s99 = sphi 0, %s98
      %s113 = sphi 0, %s99
      %s117 = sphi 0, %s117
      %s119 = sphi 0, %s117
      %s120 = sphi 0, %s119
      %s134 = sphi 0, %s120
      %s138 = sphi 0, %s138
      %s140 = sphi 0, %s138
      %s141 = sphi 0, %s140
      %s155 = sphi 0, %s141
      %s159 = sphi 0, %s159
      %s161 = sphi 0, %s159
      %s162 = sphi 0, %s161
      %s176 = sphi 0, %s162
      %s182 = sphi 0, %s184
      %s185 = sphi 0, %s182
      %s186 = sphi 0, %s185
      %s202 = sphi 0, %s186
    $region4: #{tpu_custom_call.1} parent=1 // loop_header_branch
      %23 = sbr.rel (%p21) target = $region8
    $region5: #{tpu_custom_call.1} parent=1 // loop_body
      %s25 = ssub.s32 %s20, 1
      %s26 = ssub.s32 %s20, 2
      %s27 = sadd.s32 %s20, 1
      %s28 = ssub.s32 %s20, %s27
      %p29 = scmp.eq.s32.totalorder %s28, 0
      %s31 = sadd.s32 %s30, 1
      %s32 = scalar_select %p29, %s30, %s31
      %p35 = pneg %p29
      %p36 = scmp.eq.s32.totalorder %s20, 1
      %p37 = por %p35, %p36
      %p38 = scmp.ne.s32.totalorder %s30, %s33
      %p39 = scmp.eq.s32.totalorder %s20, 0
      %p40 = por %p38, %p39
      %p41 = scmp.ne.s32.totalorder %s30, %s33
      %p42 = scmp.eq.s32.totalorder %s25, 1
      %p43 = por %p41, %p42
      %p44 = scmp.ne.s32.totalorder %s33, %s34
      %p45 = scmp.eq.s32.totalorder %s25, 0
      %p46 = por %p44, %p45
      %p47 = scmp.ne.s32.totalorder %s33, %s34
      %p48 = scmp.eq.s32.totalorder %s26, 1
      %p49 = por %p47, %p48
      %p51 = scmp.ne.s32.totalorder %s34, %s50
      %p52 = scmp.eq.s32.totalorder %s26, 0
      %p53 = por %p51, %p52
      %s55 = sadd.s32 %s54, 1
      %p58 = scmp.eq.s32.totalorder %s20, 1
      %p59 = scmp.ne.s32.totalorder %s54, %s56
      %p60 = scmp.eq.s32.totalorder %s20, 0
      %p61 = por %p59, %p60
      %p62 = scmp.ne.s32.totalorder %s54, %s56
      %p63 = scmp.eq.s32.totalorder %s25, 1
      %p64 = por %p62, %p63
      %p65 = scmp.ne.s32.totalorder %s56, %s57
      %p66 = scmp.eq.s32.totalorder %s25, 0
      %p67 = por %p65, %p66
      %p68 = scmp.ne.s32.totalorder %s56, %s57
      %p69 = scmp.eq.s32.totalorder %s26, 1
      %p70 = por %p68, %p69
      %p72 = scmp.ne.s32.totalorder %s57, %s71
      %p73 = scmp.eq.s32.totalorder %s26, 0
      %p74 = por %p72, %p73
      %s76 = sadd.s32 %s75, 1
      %p79 = scmp.eq.s32.totalorder %s20, 1
      %p80 = scmp.ne.s32.totalorder %s75, %s77
      %p81 = scmp.eq.s32.totalorder %s20, 0
      %p82 = por %p80, %p81
      %p83 = scmp.ne.s32.totalorder %s75, %s77
      %p84 = scmp.eq.s32.totalorder %s25, 1
      %p85 = por %p83, %p84
      %p86 = scmp.ne.s32.totalorder %s77, %s78
      %p87 = scmp.eq.s32.totalorder %s25, 0
      %p88 = por %p86, %p87
      %p89 = scmp.ne.s32.totalorder %s77, %s78
      %p90 = scmp.eq.s32.totalorder %s26, 1
      %p91 = por %p89, %p90
      %p93 = scmp.ne.s32.totalorder %s78, %s92
      %p94 = scmp.eq.s32.totalorder %s26, 0
      %p95 = por %p93, %p94
      %s97 = sadd.s32 %s96, 1
      %p100 = scmp.eq.s32.totalorder %s20, 1
      %p101 = scmp.ne.s32.totalorder %s96, %s98
      %p102 = scmp.eq.s32.totalorder %s20, 0
      %p103 = por %p101, %p102
      %p104 = scmp.ne.s32.totalorder %s96, %s98
      %p105 = scmp.eq.s32.totalorder %s25, 1
      %p106 = por %p104, %p105
      %p107 = scmp.ne.s32.totalorder %s98, %s99
      %p108 = scmp.eq.s32.totalorder %s25, 0
      %p109 = por %p107, %p108
      %p110 = scmp.ne.s32.totalorder %s98, %s99
      %p111 = scmp.eq.s32.totalorder %s26, 1
      %p112 = por %p110, %p111
      %p114 = scmp.ne.s32.totalorder %s99, %s113
      %p115 = scmp.eq.s32.totalorder %s26, 0
      %p116 = por %p114, %p115
      %s118 = sadd.s32 %s117, 1
      %p121 = scmp.eq.s32.totalorder %s20, 1
      %p122 = scmp.ne.s32.totalorder %s117, %s119
      %p123 = scmp.eq.s32.totalorder %s20, 0
      %p124 = por %p122, %p123
      %p125 = scmp.ne.s32.totalorder %s117, %s119
      %p126 = scmp.eq.s32.totalorder %s25, 1
      %p127 = por %p125, %p126
      %p128 = scmp.ne.s32.totalorder %s119, %s120
      %p129 = scmp.eq.s32.totalorder %s25, 0
      %p130 = por %p128, %p129
      %p131 = scmp.ne.s32.totalorder %s119, %s120
      %p132 = scmp.eq.s32.totalorder %s26, 1
      %p133 = por %p131, %p132
      %p135 = scmp.ne.s32.totalorder %s120, %s134
      %p136 = scmp.eq.s32.totalorder %s26, 0
      %p137 = por %p135, %p136
      %s139 = sadd.s32 %s138, 1
      %p142 = scmp.eq.s32.totalorder %s20, 1
      %p143 = scmp.ne.s32.totalorder %s138, %s140
      %p144 = scmp.eq.s32.totalorder %s20, 0
      %p145 = por %p143, %p144
      %p146 = scmp.ne.s32.totalorder %s138, %s140
      %p147 = scmp.eq.s32.totalorder %s25, 1
      %p148 = por %p146, %p147
      %p149 = scmp.ne.s32.totalorder %s140, %s141
      %p150 = scmp.eq.s32.totalorder %s25, 0
      %p151 = por %p149, %p150
      %p152 = scmp.ne.s32.totalorder %s140, %s141
      %p153 = scmp.eq.s32.totalorder %s26, 1
      %p154 = por %p152, %p153
      %p156 = scmp.ne.s32.totalorder %s141, %s155
      %p157 = scmp.eq.s32.totalorder %s26, 0
      %p158 = por %p156, %p157
      %s160 = sadd.s32 %s159, 1
      %p163 = scmp.eq.s32.totalorder %s20, 1
      %p164 = scmp.ne.s32.totalorder %s159, %s161
      %p165 = scmp.eq.s32.totalorder %s20, 0
      %p166 = por %p164, %p165
      %p167 = scmp.ne.s32.totalorder %s159, %s161
      %p168 = scmp.eq.s32.totalorder %s25, 1
      %p169 = por %p167, %p168
      %p170 = scmp.ne.s32.totalorder %s161, %s162
      %p171 = scmp.eq.s32.totalorder %s25, 0
      %p172 = por %p170, %p171
      %p173 = scmp.ne.s32.totalorder %s161, %s162
      %p174 = scmp.eq.s32.totalorder %s26, 1
      %p175 = por %p173, %p174
      %p177 = scmp.ne.s32.totalorder %s162, %s176
      %p178 = scmp.eq.s32.totalorder %s26, 0
      %p179 = por %p177, %p178
      %s180 = ssub.s32 %s20, %s27
      %p181 = scmp.eq.s32.totalorder %s180, 0
      %s183 = sadd.s32 %s182, 1
      %s184 = scalar_select %p181, %s182, %s183
      %p187 = pneg %p181
      %p188 = scmp.eq.s32.totalorder %s20, 1
      %p189 = por %p187, %p188
      %p190 = scmp.ne.s32.totalorder %s182, %s185
      %p191 = scmp.eq.s32.totalorder %s20, 0
      %p192 = por %p190, %p191
      %p193 = scmp.ne.s32.totalorder %s182, %s185
      %p194 = scmp.eq.s32.totalorder %s25, 1
      %p195 = por %p193, %p194
      %p196 = scmp.ne.s32.totalorder %s185, %s186
      %p197 = scmp.eq.s32.totalorder %s25, 0
      %p198 = por %p196, %p197
      %p199 = scmp.ne.s32.totalorder %s185, %s186
      %p200 = scmp.eq.s32.totalorder %s26, 1
      %p201 = por %p199, %p200
      %p203 = scmp.ne.s32.totalorder %s186, %s202
      %p204 = scmp.eq.s32.totalorder %s26, 0
      %p205 = por %p203, %p204
      %p206 = scmp.le.s32.totalorder 1, %s20
      %p207 = scmp.lt.s32.totalorder %s20, 3
      %p208 = pnand %p206, %p207
      %p209 = pneg %p208
      // Predicated region
      $region9: #{tpu_custom_call.1} parent=5 // pred_check
        _
      $region10: #{tpu_custom_call.1} parent=5 // pred_check_branch
        %211 = sbr.rel (%p208) target = $region12
      $region11: #{tpu_custom_call.1} parent=5 // pred_region
        %s212 = ssub.s32 %s20, 1
        // Predicated region
        $region13: #{tpu_custom_call.1} parent=11 // pred_check
          %p213 = pneg %p67
        $region14: #{tpu_custom_call.1} parent=11 // pred_check_branch
          %215 = sbr.rel (%p213) target = $region16
        $region15: #{tpu_custom_call.1} parent=11 // pred_region
          %s217 = ssub.s32 256, 256
          %218 = vsyncadd [#allocation7], %s217
          %s219 = sshll.u32 [#allocation6], 4
          %s220 = int_to_ptr.vmem [resolvable:$true] %s219
          %225 = dma.hbm_to_vmem [thread:$0]  %s1, 256, %s220, [#allocation7], 64, 64, 4
        $region16: #{tpu_custom_call.1} parent=11 // pred_fallthru
          _
        // Predicated region
        $region17: #{tpu_custom_call.1} parent=11 // pred_check
          %p226 = pneg %p88
        $region18: #{tpu_custom_call.1} parent=11 // pred_check_branch
          %228 = sbr.rel (%p226) target = $region20
        $region19: #{tpu_custom_call.1} parent=11 // pred_region
          _
        $region20: #{tpu_custom_call.1} parent=11 // pred_fallthru
          _
        // Predicated region
        $region21: #{tpu_custom_call.1} parent=11 // pred_check
          %p229 = pneg %p109
        $region22: #{tpu_custom_call.1} parent=11 // pred_check_branch
          %231 = sbr.rel (%p229) target = $region24
        $region23: #{tpu_custom_call.1} parent=11 // pred_region
          %s233 = ssub.s32 256, 256
          %234 = vsyncadd [#allocation7], %s233
          %s235 = sshll.u32 [#allocation8], 4
          %s236 = int_to_ptr.vmem [resolvable:$true] %s235
          %241 = dma.hbm_to_vmem [thread:$0]  %s3, 256, %s236, [#allocation7], 64, 64, 4
        $region24: #{tpu_custom_call.1} parent=11 // pred_fallthru
          _
        // Predicated region
        $region25: #{tpu_custom_call.1} parent=11 // pred_check
          %p242 = pneg %p130
        $region26: #{tpu_custom_call.1} parent=11 // pred_check_branch
          %244 = sbr.rel (%p242) target = $region28
        $region27: #{tpu_custom_call.1} parent=11 // pred_region
          _
        $region28: #{tpu_custom_call.1} parent=11 // pred_fallthru
          _
        // Predicated region
        $region29: #{tpu_custom_call.1} parent=11 // pred_check
          %p245 = pneg %p151
        $region30: #{tpu_custom_call.1} parent=11 // pred_check_branch
          %247 = sbr.rel (%p245) target = $region32
        $region31: #{tpu_custom_call.1} parent=11 // pred_region
          _
        $region32: #{tpu_custom_call.1} parent=11 // pred_fallthru
          _
        // Predicated region
        $region33: #{tpu_custom_call.1} parent=11 // pred_check
          %p248 = pneg %p172
        $region34: #{tpu_custom_call.1} parent=11 // pred_check_branch
          %250 = sbr.rel (%p248) target = $region36
        $region35: #{tpu_custom_call.1} parent=11 // pred_region
          _
        $region36: #{tpu_custom_call.1} parent=11 // pred_fallthru
          _
      $region12: #{tpu_custom_call.1} parent=5 // pred_fallthru
        _
      %p251 = scmp.lt.s32.totalorder %s20, 2
      // Predicated region
      $region37: #{tpu_custom_call.1} parent=5 // pred_check
        %p252 = pneg %p251
      $region38: #{tpu_custom_call.1} parent=5 // pred_check_branch
        %254 = sbr.rel (%p252) target = $region40
      $region39: #{tpu_custom_call.1} parent=5 // pred_region
        // Predicated region
        $region41: #{tpu_custom_call.1} parent=39 // pred_check
          %p255 = pneg %p40
        $region42: #{tpu_custom_call.1} parent=39 // pred_check_branch
          %257 = sbr.rel (%p255) target = $region44
        $region43: #{tpu_custom_call.1} parent=39 // pred_region
          %s258 = sand.u32 %s30, 1
          %s259 = scalar_lea.sflag [#allocation4], %s258
          %s260 = sand.u32 %s30, 1
          %s261 = smul.addr %s260, 8
          %s262 = scalar_lea.vmem [#allocation3], %s261
          %s264 = ssub.s32 128, 128
          %265 = vsyncadd %s259, %s264
          %s266 = smul.addr %s20, 128
          %s267 = scalar_lea.hbm %s0, %s266
          %s269 = sshll.u32 %s262, 4
          %s270 = int_to_ptr.vmem [resolvable:$true] %s269
          %272 = dma.hbm_to_vmem [thread:$0]  %s267, 128, %s270, %s259
        $region44: #{tpu_custom_call.1} parent=39 // pred_fallthru
          _
      $region40: #{tpu_custom_call.1} parent=5 // pred_fallthru
        _
      %p273 = scmp.le.s32.totalorder 1, %s20
      %p274 = scmp.lt.s32.totalorder %s20, 3
      %p275 = pnand %p273, %p274
      %p276 = pneg %p275
      // Predicated region
      $region45: #{tpu_custom_call.1} parent=5 // pred_check
        _
      $region46: #{tpu_custom_call.1} parent=5 // pred_check_branch
        %278 = sbr.rel (%p275) target = $region48
      $region47: #{tpu_custom_call.1} parent=5 // pred_region
        %s279 = ssub.s32 %s20, 1
        %s280 = sand.u32 %s33, 1
        %s281 = scalar_lea.sflag [#allocation4], %s280
        %s282 = sand.u32 %s33, 1
        %s283 = smul.addr %s282, 8
        %s284 = scalar_lea.vmem [#allocation3], %s283
        // Predicated region
        $region49: #{tpu_custom_call.1} parent=47 // pred_check
          %p285 = pneg %p46
        $region50: #{tpu_custom_call.1} parent=47 // pred_check_branch
          %287 = sbr.rel (%p285) target = $region52
        $region51: #{tpu_custom_call.1} parent=47 // pred_region
          %288 = dma.done %s281, 128
        $region52: #{tpu_custom_call.1} parent=47 // pred_fallthru
          _
        // Predicated region
        $region53: #{tpu_custom_call.1} parent=47 // pred_check
          %p289 = pneg %p67
        $region54: #{tpu_custom_call.1} parent=47 // pred_check_branch
          %291 = sbr.rel (%p289) target = $region56
        $region55: #{tpu_custom_call.1} parent=47 // pred_region
          %292 = dma.done [#allocation7], 256
        $region56: #{tpu_custom_call.1} parent=47 // pred_fallthru
          _
        // Predicated region
        $region57: #{tpu_custom_call.1} parent=47 // pred_check
          %p293 = pneg %p109
        $region58: #{tpu_custom_call.1} parent=47 // pred_check_branch
          %295 = sbr.rel (%p293) target = $region60
        $region59: #{tpu_custom_call.1} parent=47 // pred_region
          %296 = dma.done [#allocation7], 256
        $region60: #{tpu_custom_call.1} parent=47 // pred_fallthru
          _
        %s297 = sand.u32 %s33, 1
        %s298 = scalar_lea.sflag [#allocation4], %s297
        %s299 = sand.u32 %s33, 1
        %s300 = smul.addr %s299, 8
        %s301 = scalar_lea.vmem [#allocation3], %s300
        %p302 = pneg %p46
        %p303 = pneg %p43
        %p304 = pneg %p67
        %p305 = pneg %p64
        %p306 = pneg %p88
        %p307 = pneg %p85
        %p308 = pneg %p109
        %p309 = pneg %p106
        %p310 = pneg %p130
        %p311 = pneg %p127
        %p312 = pneg %p151
        %p313 = pneg %p148
        %p314 = pneg %p172
        %p315 = pneg %p169
        %p316 = pneg %p198
        %p317 = pneg %p195
        %s318 = sand.u32 %s185, 1
        %s319 = scalar_lea.sflag [#allocation5], %s318
        %s320 = sand.u32 %s185, 1
        %s321 = smul.addr %s320, 8
        %s322 = scalar_lea.vmem [#allocation9], %s321
        %v324 = vld [vmem:[%s284] sm:$0xff]
        %v325 = vpack.c.bf16 %v324, %v324
        %v326 = vld [vmem:[#allocation6] sm:$0xf]
        %v327 = vld [vmem:[#allocation6 + $0x4] sm:$0xf]
        %v328 = vld [vmem:[#allocation6 + $0x8] sm:$0xf]
        %v329 = vld [vmem:[#allocation6 + $0xc] sm:$0xf]
        %v330 = vld [vmem:[%s2] sm:$0x1]
        %v332 = vlaneseq
        %v333 = vshrl.u32 %v332, 7
        %v334 = vsub.s32 0, %v333
        %v335 = vrot.slane %v330, %v334
        %v341 = vunpack.c.l.b16 %v326
        %v342 = vunpack.c.l.b16 %v327
        %v343 = vunpack.c.l.b16 %v328
        %v344 = vunpack.c.l.b16 %v329
        %v345 = vpack.c.b16 %v342, %v341
        %v346 = vpack.c.b16 %v344, %v343
        %vm349 = vcmask 261120
        %v351 = vsel %vm349, %v325, 0
        %353 = vmatprep.subr.bf16.mxu0 0
        %354 = vmatpush1.bf16.msra.mxu0 %v345
        %355 = vmatprep.subr.bf16.mxu0 0
        %356 = vmatpush1.bf16.msra.mxu0 %v346
        %357 = vmatprep.subr.bf16.mxu0 0
        %358 = vmatpush1.bf16.msra.mxu0 0
        %359 = vmatprep.subr.bf16.mxu0 0
        %360 = vmatpush1.bf16.msra.mxu0 0
        %361 = vmatprep.subr.bf16.mxu0 0
        %362 = vmatpush1.bf16.msra.mxu0 0
        %363 = vmatprep.subr.bf16.mxu0 0
        %364 = vmatpush1.bf16.msra.mxu0 0
        %365 = vmatprep.subr.bf16.mxu0 0
        %366 = vmatpush1.bf16.msra.mxu0 0
        %367 = vmatprep.subr.bf16.mxu0 0
        %368 = vmatpush1.bf16.msra.mxu0 0
        %369 = vmatprep.subr.bf16.mxu0 0
        %370 = vmatpush1.bf16.msra.mxu0 0
        %371 = vmatprep.subr.bf16.mxu0 0
        %372 = vmatpush1.bf16.msra.mxu0 0
        %373 = vmatprep.subr.bf16.mxu0 0
        %374 = vmatpush1.bf16.msra.mxu0 0
        %375 = vmatprep.subr.bf16.mxu0 0
        %376 = vmatpush1.bf16.msra.mxu0 0
        %377 = vmatprep.subr.bf16.mxu0 0
        %378 = vmatpush1.bf16.msra.mxu0 0
        %379 = vmatprep.subr.bf16.mxu0 0
        %380 = vmatpush1.bf16.msra.mxu0 0
        %381 = vmatprep.subr.bf16.mxu0 0
        %382 = vmatpush1.bf16.msra.mxu0 0
        %383 = vmatprep.subr.bf16.mxu0 0
        %384 = vmatpush1.bf16.msra.mxu0 0
        %385 = vmatprep.mubr.bf16.mxu0 0
        %386 = vmatmul.mubr.bf16.gmra.mrb[0].mxu0 %v351
        %v387 = vpop.f32.mrb[0].mxu0
        %v388 = vadd.f32 %v335, %v387
        %v389 = vpop.f32.mrb[0].mxu0
        %v390 = vpop.f32.mrb[0].mxu0
        %v391 = vpop.f32.mrb[0].mxu0
        %392 = vdwg.mxu0
        %v393 = vpack.c.bf16 %v388, %v388
        %395 = vrot.lane.b32.xlu0 %v393, 96
        %v396 = vpop.permute.xlu0 %395
        %vm397 = vcmask 64512
        %v399 = vsel %vm397, %v393, 0
        %v402 = vsel %vm397, %v396, 0
        %404 = vmatprep.subr.bf16.mxu0 0
        %405 = vmatpush1.bf16.xpose.msra.mxu0 %v402
        %406 = vmatprep.subr.bf16.mxu0 0
        %407 = vmatpush1.bf16.xpose.msra.mxu0 0
        %408 = vmatprep.subr.bf16.mxu0 0
        %409 = vmatpush1.bf16.xpose.msra.mxu0 0
        %410 = vmatprep.subr.bf16.mxu0 0
        %411 = vmatpush1.bf16.xpose.msra.mxu0 0
        %412 = vmatprep.subr.bf16.mxu0 0
        %413 = vmatpush1.bf16.xpose.msra.mxu0 0
        %414 = vmatprep.subr.bf16.mxu0 0
        %415 = vmatpush1.bf16.xpose.msra.mxu0 0
        %416 = vmatprep.subr.bf16.mxu0 0
        %417 = vmatpush1.bf16.xpose.msra.mxu0 0
        %418 = vmatprep.subr.bf16.mxu0 0
        %419 = vmatpush1.bf16.xpose.msra.mxu0 0
        %420 = vmatprep.subr.bf16.mxu0 0
        %421 = vmatpush1.bf16.xpose.msra.mxu0 0
        %422 = vmatprep.subr.bf16.mxu0 0
        %423 = vmatpush1.bf16.xpose.msra.mxu0 0
        %424 = vmatprep.subr.bf16.mxu0 0
        %425 = vmatpush1.bf16.xpose.msra.mxu0 0
        %426 = vmatprep.subr.bf16.mxu0 0
        %427 = vmatpush1.bf16.xpose.msra.mxu0 0
        %428 = vmatprep.subr.bf16.mxu0 0
        %429 = vmatpush1.bf16.xpose.msra.mxu0 0
        %430 = vmatprep.subr.bf16.mxu0 0
        %431 = vmatpush1.bf16.xpose.msra.mxu0 0
        %432 = vmatprep.subr.bf16.mxu0 0
        %433 = vmatpush1.bf16.xpose.msra.mxu0 0
        %434 = vmatprep.subr.bf16.mxu0 0
        %435 = vmatpush1.bf16.xpose.msra.mxu0 0
        %436 = vmatprep.mubr.bf16.mxu0 0
        %437 = vmatmul.mubr.bf16.gmra.mrb[0].mxu0 %v399
        %v438 = vpop.f32.mrb[0].mxu0
        %v439 = vadd.f32 0.0, %v438
        %v440 = vpop.f32.mrb[0].mxu0
        %v441 = vpop.f32.mrb[0].mxu0
        %v442 = vpop.f32.mrb[0].mxu0
        %443 = vdwg.mxu0
        %v444 = vsel %vm397, %v439, -inf
        %445 = vmax.xlane.f32.xlu0 %v444
        %v446 = vpop.xlane.xlu0 %445
        %v447 = vsub.f32 %v439, %v446
        %v448 = vmul.f32 %v447, 1.442695
        %v449 = vpow.pop %v448
        %v450 = vsel %vm397, %v449, 0.0
        %451 = vadd.xlane.f32.xlu0 %v450
        %v452 = vpop.xlane.xlu0 %451
        %v453 = vrcp.pop %v452
        %v454 = vmul.f32 %v449, %v453
        %v455 = vpack.c.bf16 %v454, %v454
        %456 = vrot.lane.b32.xlu0 %v393, 64
        %v457 = vpop.permute.xlu0 %456
        %v459 = vsel %vm397, %v455, 0
        %vm461 = vcmask 1043456
        %v463 = vsel %vm461, %v457, 0
        %465 = vmatprep.subr.bf16.mxu0 0
        %466 = vmatpush1.bf16.msra.mxu0 %v463
        %467 = vmatprep.subr.bf16.mxu0 0
        %468 = vmatpush1.bf16.msra.mxu0 0
        %469 = vmatprep.subr.bf16.mxu0 0
        %470 = vmatpush1.bf16.msra.mxu0 0
        %471 = vmatprep.subr.bf16.mxu0 0
        %472 = vmatpush1.bf16.msra.mxu0 0
        %473 = vmatprep.subr.bf16.mxu0 0
        %474 = vmatpush1.bf16.msra.mxu0 0
        %475 = vmatprep.subr.bf16.mxu0 0
        %476 = vmatpush1.bf16.msra.mxu0 0
        %477 = vmatprep.subr.bf16.mxu0 0
        %478 = vmatpush1.bf16.msra.mxu0 0
        %479 = vmatprep.subr.bf16.mxu0 0
        %480 = vmatpush1.bf16.msra.mxu0 0
        %481 = vmatprep.subr.bf16.mxu0 0
        %482 = vmatpush1.bf16.msra.mxu0 0
        %483 = vmatprep.subr.bf16.mxu0 0
        %484 = vmatpush1.bf16.msra.mxu0 0
        %485 = vmatprep.subr.bf16.mxu0 0
        %486 = vmatpush1.bf16.msra.mxu0 0
        %487 = vmatprep.subr.bf16.mxu0 0
        %488 = vmatpush1.bf16.msra.mxu0 0
        %489 = vmatprep.subr.bf16.mxu0 0
        %490 = vmatpush1.bf16.msra.mxu0 0
        %491 = vmatprep.subr.bf16.mxu0 0
        %492 = vmatpush1.bf16.msra.mxu0 0
        %493 = vmatprep.subr.bf16.mxu0 0
        %494 = vmatpush1.bf16.msra.mxu0 0
        %495 = vmatprep.subr.bf16.mxu0 0
        %496 = vmatpush1.bf16.msra.mxu0 0
        %497 = vmatprep.mubr.bf16.mxu0 0
        %498 = vmatmul.mubr.bf16.gmra.mrb[0].mxu0 %v459
        %v499 = vpop.f32.mrb[0].mxu0
        %v500 = vadd.f32 0.0, %v499
        %v501 = vpop.f32.mrb[0].mxu0
        %v502 = vpop.f32.mrb[0].mxu0
        %v503 = vpop.f32.mrb[0].mxu0
        %504 = vdwg.mxu0
        %505 = vst.msk [vmem:[#allocation2] sm:$0xff] %vm397, %v500
        %506 = vrot.lane.b32.xlu0 %v393, 120
        %v507 = vpop.permute.xlu0 %506
        %508 = vrot.lane.b32.xlu0 %v393, 88
        %v509 = vpop.permute.xlu0 %508
        %v511 = vsel %vm397, %v507, 0
        %v514 = vsel %vm397, %v509, 0
        %516 = vmatprep.subr.bf16.mxu0 0
        %517 = vmatpush1.bf16.xpose.msra.mxu0 %v514
        %518 = vmatprep.subr.bf16.mxu0 0
        %519 = vmatpush1.bf16.xpose.msra.mxu0 0
        %520 = vmatprep.subr.bf16.mxu0 0
        %521 = vmatpush1.bf16.xpose.msra.mxu0 0
        %522 = vmatprep.subr.bf16.mxu0 0
        %523 = vmatpush1.bf16.xpose.msra.mxu0 0
        %524 = vmatprep.subr.bf16.mxu0 0
        %525 = vmatpush1.bf16.xpose.msra.mxu0 0
        %526 = vmatprep.subr.bf16.mxu0 0
        %527 = vmatpush1.bf16.xpose.msra.mxu0 0
        %528 = vmatprep.subr.bf16.mxu0 0
        %529 = vmatpush1.bf16.xpose.msra.mxu0 0
        %530 = vmatprep.subr.bf16.mxu0 0
        %531 = vmatpush1.bf16.xpose.msra.mxu0 0
        %532 = vmatprep.subr.bf16.mxu0 0
        %533 = vmatpush1.bf16.xpose.msra.mxu0 0
        %534 = vmatprep.subr.bf16.mxu0 0
        %535 = vmatpush1.bf16.xpose.msra.mxu0 0
        %536 = vmatprep.subr.bf16.mxu0 0
        %537 = vmatpush1.bf16.xpose.msra.mxu0 0
        %538 = vmatprep.subr.bf16.mxu0 0
        %539 = vmatpush1.bf16.xpose.msra.mxu0 0
        %540 = vmatprep.subr.bf16.mxu0 0
        %541 = vmatpush1.bf16.xpose.msra.mxu0 0
        %542 = vmatprep.subr.bf16.mxu0 0
        %543 = vmatpush1.bf16.xpose.msra.mxu0 0
        %544 = vmatprep.subr.bf16.mxu0 0
        %545 = vmatpush1.bf16.xpose.msra.mxu0 0
        %546 = vmatprep.subr.bf16.mxu0 0
        %547 = vmatpush1.bf16.xpose.msra.mxu0 0
        %548 = vmatprep.mubr.bf16.mxu0 0
        %549 = vmatmul.mubr.bf16.gmra.mrb[0].mxu0 %v511
        %v550 = vpop.f32.mrb[0].mxu0
        %v551 = vadd.f32 0.0, %v550
        %v552 = vpop.f32.mrb[0].mxu0
        %v553 = vpop.f32.mrb[0].mxu0
        %v554 = vpop.f32.mrb[0].mxu0
        %555 = vdwg.mxu0
        %v556 = vsel %vm397, %v551, -inf
        %557 = vmax.xlane.f32.xlu0 %v556
        %v558 = vpop.xlane.xlu0 %557
        %v559 = vsub.f32 %v551, %v558
        %v560 = vmul.f32 %v559, 1.442695
        %v561 = vpow.pop %v560
        %v562 = vsel %vm397, %v561, 0.0
        %563 = vadd.xlane.f32.xlu0 %v562
        %v564 = vpop.xlane.xlu0 %563
        %v565 = vrcp.pop %v564
        %v566 = vmul.f32 %v561, %v565
        %v567 = vpack.c.bf16 %v566, %v566
        %568 = vrot.lane.b32.xlu0 %v393, 56
        %v569 = vpop.permute.xlu0 %568
        %v571 = vsel %vm397, %v567, 0
        %v574 = vsel %vm461, %v569, 0
        %576 = vmatprep.subr.bf16.mxu0 0
        %577 = vmatpush1.bf16.msra.mxu0 %v574
        %578 = vmatprep.subr.bf16.mxu0 0
        %579 = vmatpush1.bf16.msra.mxu0 0
        %580 = vmatprep.subr.bf16.mxu0 0
        %581 = vmatpush1.bf16.msra.mxu0 0
        %582 = vmatprep.subr.bf16.mxu0 0
        %583 = vmatpush1.bf16.msra.mxu0 0
        %584 = vmatprep.subr.bf16.mxu0 0
        %585 = vmatpush1.bf16.msra.mxu0 0
        %586 = vmatprep.subr.bf16.mxu0 0
        %587 = vmatpush1.bf16.msra.mxu0 0
        %588 = vmatprep.subr.bf16.mxu0 0
        %589 = vmatpush1.bf16.msra.mxu0 0
        %590 = vmatprep.subr.bf16.mxu0 0
        %591 = vmatpush1.bf16.msra.mxu0 0
        %592 = vmatprep.subr.bf16.mxu0 0
        %593 = vmatpush1.bf16.msra.mxu0 0
        %594 = vmatprep.subr.bf16.mxu0 0
        %595 = vmatpush1.bf16.msra.mxu0 0
        %596 = vmatprep.subr.bf16.mxu0 0
        %597 = vmatpush1.bf16.msra.mxu0 0
        %598 = vmatprep.subr.bf16.mxu0 0
        %599 = vmatpush1.bf16.msra.mxu0 0
        %600 = vmatprep.subr.bf16.mxu0 0
        %601 = vmatpush1.bf16.msra.mxu0 0
        %602 = vmatprep.subr.bf16.mxu0 0
        %603 = vmatpush1.bf16.msra.mxu0 0
        %604 = vmatprep.subr.bf16.mxu0 0
        %605 = vmatpush1.bf16.msra.mxu0 0
        %606 = vmatprep.subr.bf16.mxu0 0
        %607 = vmatpush1.bf16.msra.mxu0 0
        %608 = vmatprep.mubr.bf16.mxu0 0
        %609 = vmatmul.mubr.bf16.gmra.mrb[0].mxu0 %v571
        %v610 = vpop.f32.mrb[0].mxu0
        %v611 = vadd.f32 0.0, %v610
        %v612 = vpop.f32.mrb[0].mxu0
        %v613 = vpop.f32.mrb[0].mxu0
        %v614 = vpop.f32.mrb[0].mxu0
        %615 = vdwg.mxu0
        %617 = vrot.lane.b32.xlu0 %v611, 8
        %v618 = vpop.permute.xlu0 %617
        %vm620 = vcmask 130112
        %621 = vst.msk [vmem:[#allocation2] sm:$0xff] %vm620, %v618
        %622 = vrot.lane.b32.xlu0 %v393, 112
        %v623 = vpop.permute.xlu0 %622
        %624 = vrot.lane.b32.xlu0 %v393, 80
        %v625 = vpop.permute.xlu0 %624
        %v627 = vsel %vm397, %v623, 0
        %v630 = vsel %vm397, %v625, 0
        %632 = vmatprep.subr.bf16.mxu0 0
        %633 = vmatpush1.bf16.xpose.msra.mxu0 %v630
        %634 = vmatprep.subr.bf16.mxu0 0
        %635 = vmatpush1.bf16.xpose.msra.mxu0 0
        %636 = vmatprep.subr.bf16.mxu0 0
        %637 = vmatpush1.bf16.xpose.msra.mxu0 0
        %638 = vmatprep.subr.bf16.mxu0 0
        %639 = vmatpush1.bf16.xpose.msra.mxu0 0
        %640 = vmatprep.subr.bf16.mxu0 0
        %641 = vmatpush1.bf16.xpose.msra.mxu0 0
        %642 = vmatprep.subr.bf16.mxu0 0
        %643 = vmatpush1.bf16.xpose.msra.mxu0 0
        %644 = vmatprep.subr.bf16.mxu0 0
        %645 = vmatpush1.bf16.xpose.msra.mxu0 0
        %646 = vmatprep.subr.bf16.mxu0 0
        %647 = vmatpush1.bf16.xpose.msra.mxu0 0
        %648 = vmatprep.subr.bf16.mxu0 0
        %649 = vmatpush1.bf16.xpose.msra.mxu0 0
        %650 = vmatprep.subr.bf16.mxu0 0
        %651 = vmatpush1.bf16.xpose.msra.mxu0 0
        %652 = vmatprep.subr.bf16.mxu0 0
        %653 = vmatpush1.bf16.xpose.msra.mxu0 0
        %654 = vmatprep.subr.bf16.mxu0 0
        %655 = vmatpush1.bf16.xpose.msra.mxu0 0
        %656 = vmatprep.subr.bf16.mxu0 0
        %657 = vmatpush1.bf16.xpose.msra.mxu0 0
        %658 = vmatprep.subr.bf16.mxu0 0
        %659 = vmatpush1.bf16.xpose.msra.mxu0 0
        %660 = vmatprep.subr.bf16.mxu0 0
        %661 = vmatpush1.bf16.xpose.msra.mxu0 0
        %662 = vmatprep.subr.bf16.mxu0 0
        %663 = vmatpush1.bf16.xpose.msra.mxu0 0
        %664 = vmatprep.mubr.bf16.mxu0 0
        %665 = vmatmul.mubr.bf16.gmra.mrb[0].mxu0 %v627
        %v666 = vpop.f32.mrb[0].mxu0
        %v667 = vadd.f32 0.0, %v666
        %v668 = vpop.f32.mrb[0].mxu0
        %v669 = vpop.f32.mrb[0].mxu0
        %v670 = vpop.f32.mrb[0].mxu0
        %671 = vdwg.mxu0
        %v672 = vsel %vm397, %v667, -inf
        %673 = vmax.xlane.f32.xlu0 %v672
        %v674 = vpop.xlane.xlu0 %673
        %v675 = vsub.f32 %v667, %v674
        %v676 = vmul.f32 %v675, 1.442695
        %v677 = vpow.pop %v676
        %v678 = vsel %vm397, %v677, 0.0
        %679 = vadd.xlane.f32.xlu0 %v678
        %v680 = vpop.xlane.xlu0 %679
        %v681 = vrcp.pop %v680
        %v682 = vmul.f32 %v677, %v681
        %v683 = vpack.c.bf16 %v682, %v682
        %684 = vrot.lane.b32.xlu0 %v393, 48
        %v685 = vpop.permute.xlu0 %684
        %v687 = vsel %vm397, %v683, 0
        %v690 = vsel %vm461, %v685, 0
        %692 = vmatprep.subr.bf16.mxu0 0
        %693 = vmatpush1.bf16.msra.mxu0 %v690
        %694 = vmatprep.subr.bf16.mxu0 0
        %695 = vmatpush1.bf16.msra.mxu0 0
        %696 = vmatprep.subr.bf16.mxu0 0
        %697 = vmatpush1.bf16.msra.mxu0 0
        %698 = vmatprep.subr.bf16.mxu0 0
        %699 = vmatpush1.bf16.msra.mxu0 0
        %700 = vmatprep.subr.bf16.mxu0 0
        %701 = vmatpush1.bf16.msra.mxu0 0
        %702 = vmatprep.subr.bf16.mxu0 0
        %703 = vmatpush1.bf16.msra.mxu0 0
        %704 = vmatprep.subr.bf16.mxu0 0
        %705 = vmatpush1.bf16.msra.mxu0 0
        %706 = vmatprep.subr.bf16.mxu0 0
        %707 = vmatpush1.bf16.msra.mxu0 0
        %708 = vmatprep.subr.bf16.mxu0 0
        %709 = vmatpush1.bf16.msra.mxu0 0
        %710 = vmatprep.subr.bf16.mxu0 0
        %711 = vmatpush1.bf16.msra.mxu0 0
        %712 = vmatprep.subr.bf16.mxu0 0
        %713 = vmatpush1.bf16.msra.mxu0 0
        %714 = vmatprep.subr.bf16.mxu0 0
        %715 = vmatpush1.bf16.msra.mxu0 0
        %716 = vmatprep.subr.bf16.mxu0 0
        %717 = vmatpush1.bf16.msra.mxu0 0
        %718 = vmatprep.subr.bf16.mxu0 0
        %719 = vmatpush1.bf16.msra.mxu0 0
        %720 = vmatprep.subr.bf16.mxu0 0
        %721 = vmatpush1.bf16.msra.mxu0 0
        %722 = vmatprep.subr.bf16.mxu0 0
        %723 = vmatpush1.bf16.msra.mxu0 0
        %724 = vmatprep.mubr.bf16.mxu0 0
        %725 = vmatmul.mubr.bf16.gmra.mrb[0].mxu0 %v687
        %v726 = vpop.f32.mrb[0].mxu0
        %v727 = vadd.f32 0.0, %v726
        %v728 = vpop.f32.mrb[0].mxu0
        %v729 = vpop.f32.mrb[0].mxu0
        %v730 = vpop.f32.mrb[0].mxu0
        %731 = vdwg.mxu0
        %733 = vrot.lane.b32.xlu0 %v727, 16
        %v734 = vpop.permute.xlu0 %733
        %vm736 = vcmask 195712
        %737 = vst.msk [vmem:[#allocation2] sm:$0xff] %vm736, %v734
        %738 = vrot.lane.b32.xlu0 %v393, 104
        %v739 = vpop.permute.xlu0 %738
        %740 = vrot.lane.b32.xlu0 %v393, 72
        %v741 = vpop.permute.xlu0 %740
        %v743 = vsel %vm397, %v739, 0
        %v746 = vsel %vm397, %v741, 0
        %748 = vmatprep.subr.bf16.mxu0 0
        %749 = vmatpush1.bf16.xpose.msra.mxu0 %v746
        %750 = vmatprep.subr.bf16.mxu0 0
        %751 = vmatpush1.bf16.xpose.msra.mxu0 0
        %752 = vmatprep.subr.bf16.mxu0 0
        %753 = vmatpush1.bf16.xpose.msra.mxu0 0
        %754 = vmatprep.subr.bf16.mxu0 0
        %755 = vmatpush1.bf16.xpose.msra.mxu0 0
        %756 = vmatprep.subr.bf16.mxu0 0
        %757 = vmatpush1.bf16.xpose.msra.mxu0 0
        %758 = vmatprep.subr.bf16.mxu0 0
        %759 = vmatpush1.bf16.xpose.msra.mxu0 0
        %760 = vmatprep.subr.bf16.mxu0 0
        %761 = vmatpush1.bf16.xpose.msra.mxu0 0
        %762 = vmatprep.subr.bf16.mxu0 0
        %763 = vmatpush1.bf16.xpose.msra.mxu0 0
        %764 = vmatprep.subr.bf16.mxu0 0
        %765 = vmatpush1.bf16.xpose.msra.mxu0 0
        %766 = vmatprep.subr.bf16.mxu0 0
        %767 = vmatpush1.bf16.xpose.msra.mxu0 0
        %768 = vmatprep.subr.bf16.mxu0 0
        %769 = vmatpush1.bf16.xpose.msra.mxu0 0
        %770 = vmatprep.subr.bf16.mxu0 0
        %771 = vmatpush1.bf16.xpose.msra.mxu0 0
        %772 = vmatprep.subr.bf16.mxu0 0
        %773 = vmatpush1.bf16.xpose.msra.mxu0 0
        %774 = vmatprep.subr.bf16.mxu0 0
        %775 = vmatpush1.bf16.xpose.msra.mxu0 0
        %776 = vmatprep.subr.bf16.mxu0 0
        %777 = vmatpush1.bf16.xpose.msra.mxu0 0
        %778 = vmatprep.subr.bf16.mxu0 0
        %779 = vmatpush1.bf16.xpose.msra.mxu0 0
        %780 = vmatprep.mubr.bf16.mxu0 0
        %781 = vmatmul.mubr.bf16.gmra.mrb[0].mxu0 %v743
        %v782 = vpop.f32.mrb[0].mxu0
        %v783 = vadd.f32 0.0, %v782
        %v784 = vpop.f32.mrb[0].mxu0
        %v785 = vpop.f32.mrb[0].mxu0
        %v786 = vpop.f32.mrb[0].mxu0
        %787 = vdwg.mxu0
        %v788 = vsel %vm397, %v783, -inf
        %789 = vmax.xlane.f32.xlu0 %v788
        %v790 = vpop.xlane.xlu0 %789
        %v791 = vsub.f32 %v783, %v790
        %v792 = vmul.f32 %v791, 1.442695
        %v793 = vpow.pop %v792
        %v794 = vsel %vm397, %v793, 0.0
        %795 = vadd.xlane.f32.xlu0 %v794
        %v796 = vpop.xlane.xlu0 %795
        %v797 = vrcp.pop %v796
        %v798 = vmul.f32 %v793, %v797
        %v799 = vpack.c.bf16 %v798, %v798
        %800 = vrot.lane.b32.xlu0 %v393, 40
        %v801 = vpop.permute.xlu0 %800
        %v803 = vsel %vm397, %v799, 0
        %v806 = vsel %vm461, %v801, 0
        %808 = vmatprep.subr.bf16.mxu0 0
        %809 = vmatpush1.bf16.msra.mxu0 %v806
        %810 = vmatprep.subr.bf16.mxu0 0
        %811 = vmatpush1.bf16.msra.mxu0 0
        %812 = vmatprep.subr.bf16.mxu0 0
        %813 = vmatpush1.bf16.msra.mxu0 0
        %814 = vmatprep.subr.bf16.mxu0 0
        %815 = vmatpush1.bf16.msra.mxu0 0
        %816 = vmatprep.subr.bf16.mxu0 0
        %817 = vmatpush1.bf16.msra.mxu0 0
        %818 = vmatprep.subr.bf16.mxu0 0
        %819 = vmatpush1.bf16.msra.mxu0 0
        %820 = vmatprep.subr.bf16.mxu0 0
        %821 = vmatpush1.bf16.msra.mxu0 0
        %822 = vmatprep.subr.bf16.mxu0 0
        %823 = vmatpush1.bf16.msra.mxu0 0
        %824 = vmatprep.subr.bf16.mxu0 0
        %825 = vmatpush1.bf16.msra.mxu0 0
        %826 = vmatprep.subr.bf16.mxu0 0
        %827 = vmatpush1.bf16.msra.mxu0 0
        %828 = vmatprep.subr.bf16.mxu0 0
        %829 = vmatpush1.bf16.msra.mxu0 0
        %830 = vmatprep.subr.bf16.mxu0 0
        %831 = vmatpush1.bf16.msra.mxu0 0
        %832 = vmatprep.subr.bf16.mxu0 0
        %833 = vmatpush1.bf16.msra.mxu0 0
        %834 = vmatprep.subr.bf16.mxu0 0
        %835 = vmatpush1.bf16.msra.mxu0 0
        %836 = vmatprep.subr.bf16.mxu0 0
        %837 = vmatpush1.bf16.msra.mxu0 0
        %838 = vmatprep.subr.bf16.mxu0 0
        %839 = vmatpush1.bf16.msra.mxu0 0
        %840 = vmatprep.mubr.bf16.mxu0 0
        %841 = vmatmul.mubr.bf16.gmra.mrb[0].mxu0 %v803
        %v842 = vpop.f32.mrb[0].mxu0
        %v843 = vadd.f32 0.0, %v842
        %v844 = vpop.f32.mrb[0].mxu0
        %v845 = vpop.f32.mrb[0].mxu0
        %v846 = vpop.f32.mrb[0].mxu0
        %847 = vdwg.mxu0
        %849 = vrot.lane.b32.xlu0 %v843, 24
        %v850 = vpop.permute.xlu0 %849
        %vm852 = vcmask 261312
        %853 = vst.msk [vmem:[#allocation2] sm:$0xff] %vm852, %v850
        %v854 = vld [vmem:[#allocation2] sm:$0xff]
        %v855 = vpack.c.bf16 %v854, %v854
        %v856 = vld [vmem:[#allocation8] sm:$0xf]
        %v857 = vld [vmem:[#allocation8 + $0x4] sm:$0xf]
        %v858 = vld [vmem:[#allocation8 + $0x8] sm:$0xf]
        %v859 = vld [vmem:[#allocation8 + $0xc] sm:$0xf]
        %v860 = vld [vmem:[%s4] sm:$0x1]
        %v862 = vlaneseq
        %v863 = vshrl.u32 %v862, 7
        %v864 = vsub.s32 0, %v863
        %v865 = vrot.slane %v860, %v864
        %v871 = vunpack.c.l.b16 %v856
        %v872 = vunpack.c.l.b16 %v857
        %v873 = vunpack.c.l.b16 %v858
        %v874 = vunpack.c.l.b16 %v859
        %v875 = vpack.c.b16 %v872, %v871
        %v876 = vpack.c.b16 %v874, %v873
        %v880 = vsel %vm349, %v855, 0
        %882 = vmatprep.subr.bf16.mxu0 0
        %883 = vmatpush1.bf16.msra.mxu0 %v875
        %884 = vmatprep.subr.bf16.mxu0 0
        %885 = vmatpush1.bf16.msra.mxu0 %v876
        %886 = vmatprep.subr.bf16.mxu0 0
        %887 = vmatpush1.bf16.msra.mxu0 0
        %888 = vmatprep.subr.bf16.mxu0 0
        %889 = vmatpush1.bf16.msra.mxu0 0
        %890 = vmatprep.subr.bf16.mxu0 0
        %891 = vmatpush1.bf16.msra.mxu0 0
        %892 = vmatprep.subr.bf16.mxu0 0
        %893 = vmatpush1.bf16.msra.mxu0 0
        %894 = vmatprep.subr.bf16.mxu0 0
        %895 = vmatpush1.bf16.msra.mxu0 0
        %896 = vmatprep.subr.bf16.mxu0 0
        %897 = vmatpush1.bf16.msra.mxu0 0
        %898 = vmatprep.subr.bf16.mxu0 0
        %899 = vmatpush1.bf16.msra.mxu0 0
        %900 = vmatprep.subr.bf16.mxu0 0
        %901 = vmatpush1.bf16.msra.mxu0 0
        %902 = vmatprep.subr.bf16.mxu0 0
        %903 = vmatpush1.bf16.msra.mxu0 0
        %904 = vmatprep.subr.bf16.mxu0 0
        %905 = vmatpush1.bf16.msra.mxu0 0
        %906 = vmatprep.subr.bf16.mxu0 0
        %907 = vmatpush1.bf16.msra.mxu0 0
        %908 = vmatprep.subr.bf16.mxu0 0
        %909 = vmatpush1.bf16.msra.mxu0 0
        %910 = vmatprep.subr.bf16.mxu0 0
        %911 = vmatpush1.bf16.msra.mxu0 0
        %912 = vmatprep.subr.bf16.mxu0 0
        %913 = vmatpush1.bf16.msra.mxu0 0
        %914 = vmatprep.mubr.bf16.mxu0 0
        %915 = vmatmul.mubr.bf16.gmra.mrb[0].mxu0 %v880
        %v916 = vpop.f32.mrb[0].mxu0
        %v917 = vadd.f32 %v865, %v916
        %v918 = vpop.f32.mrb[0].mxu0
        %v919 = vpop.f32.mrb[0].mxu0
        %v920 = vpop.f32.mrb[0].mxu0
        %921 = vdwg.mxu0
        %v922 = vld [vmem:[%s284] sm:$0xff]
        %v923 = vadd.f32 %v917, %v922
        %v924 = vsel %vm349, %v923, 0.0
        %925 = vadd.xlane.f32.xlu0 %v924
        %v926 = vpop.xlane.xlu0 %925
        %v927 = vrcp.pop 32.0
        %v928 = vmul.f32 %v926, %v927
        %v929 = vmul.f32 %v923, %v923
        %v930 = vsel %vm349, %v929, 0.0
        %931 = vadd.xlane.f32.xlu0 %v930
        %v932 = vpop.xlane.xlu0 %931
        %v933 = vmul.f32 %v932, %v927
        %v934 = vmul.f32 %v928, %v928
        %v935 = vsub.f32 %v933, %v934
        %v936 = vsub.f32 %v923, %v928
        %v937 = vadd.f32 %v935, 1e-12
        %v938 = vrsqrt.pop %v937
        %v939 = vmul.f32 %v936, %v938
        %v940 = vld [vmem:[%s5] sm:$0x1]
        %v942 = vlaneseq
        %v943 = vshrl.u32 %v942, 7
        %v944 = vsub.s32 0, %v943
        %v945 = vrot.slane %v940, %v944
        %v947 = vmul.f32 %v939, %v945
        %v948 = vld [vmem:[%s6] sm:$0x1]
        %v950 = vlaneseq
        %v951 = vshrl.u32 %v950, 7
        %v952 = vsub.s32 0, %v951
        %v953 = vrot.slane %v948, %v952
        %v955 = vadd.f32 %v947, %v953
        %956 = vst.msk [vmem:[%s322] sm:$0xff] %vm349, %v955
        %s957 = sand.u32 %s185, 1
        %s958 = scalar_lea.sflag [#allocation5], %s957
        %s959 = sand.u32 %s185, 1
        %s960 = smul.addr %s959, 8
        %s961 = scalar_lea.vmem [#allocation9], %s960
        // Predicated region
        $region61: #{tpu_custom_call.1} parent=47 // pred_check
          %p962 = pneg %p195
        $region62: #{tpu_custom_call.1} parent=47 // pred_check_branch
          %964 = sbr.rel (%p962) target = $region64
        $region63: #{tpu_custom_call.1} parent=47 // pred_region
          %s966 = ssub.s32 128, 128
          %967 = vsyncadd %s958, %s966
          %s968 = smul.addr %s25, 128
          %s969 = scalar_lea.hbm %s7, %s968
          %s971 = sshll.u32 %s961, 4
          %s972 = int_to_ptr.vmem [resolvable:$true] %s971
          %974 = dma.vmem_to_hbm [thread:$0]  %s972, 128, %s969, %s958
        $region64: #{tpu_custom_call.1} parent=47 // pred_fallthru
          _
      $region48: #{tpu_custom_call.1} parent=5 // pred_fallthru
        _
      %p975 = scmp.le.s32.totalorder 2, %s20
      // Predicated region
      $region65: #{tpu_custom_call.1} parent=5 // pred_check
        %p976 = pneg %p975
      $region66: #{tpu_custom_call.1} parent=5 // pred_check_branch
        %978 = sbr.rel (%p976) target = $region68
      $region67: #{tpu_custom_call.1} parent=5 // pred_region
        %s979 = ssub.s32 %s20, 2
        // Predicated region
        $region69: #{tpu_custom_call.1} parent=67 // pred_check
          %p980 = pneg %p201
        $region70: #{tpu_custom_call.1} parent=67 // pred_check_branch
          %982 = sbr.rel (%p980) target = $region72
        $region71: #{tpu_custom_call.1} parent=67 // pred_region
          %s983 = sand.u32 %s186, 1
          %s984 = scalar_lea.sflag [#allocation5], %s983
          %s985 = sand.u32 %s186, 1
          %s986 = smul.addr %s985, 8
          %s987 = scalar_lea.vmem [#allocation9], %s986
          %988 = dma.done %s984, 128
        $region72: #{tpu_custom_call.1} parent=67 // pred_fallthru
          _
      $region68: #{tpu_custom_call.1} parent=5 // pred_fallthru
        _
    $region6: #{tpu_custom_call.1} parent=1 // loop_footer
      %s24 = sadd.s32 1, %s20
    $region7: #{tpu_custom_call.1} parent=1 // loop_footer_branch
      %19 = sbr.rel target = $region3
    $region8: #{tpu_custom_call.1} parent=1 // loop_exit
      _
    %989 = vsyncpa [#allocation4], 1
    %s990 = scalar_lea.sflag [#allocation4], 1
    %991 = vsyncpa %s990, 1
    %992 = vsyncpa [#allocation7], 1
    %993 = vsyncpa [#allocation5], 1
    %s994 = scalar_lea.sflag [#allocation5], 1
    %995 = vsyncpa %s994, 1

</llo_original>
